<compile_context>
chip_gen: v6e
topology: v6e:2x2x1
jax: 0.10.0
libtpu: 0.0.40
codegen_flags: <defaults>
</compile_context>

<pallas_src>
import functools

import jax
import jax.numpy as jnp
from jax.experimental import pallas as pl
from jax.experimental.pallas import tpu as pltpu

_SUBLANE = 8   # f32 sublane height; batch tiles kept multiples of this


def _round_up(n, m):
    return (n + m - 1) // m * m


def _elu(x):
    # ELU(alpha=1): x if x > 0 else exp(x) - 1. exp runs on the EUP (own issue slot),
    # select on the VPU. Kept in f32 (right choice on v5e; only revisit bf16 exp on
    # v6e/v7x if the EUP slot ever saturates at very large B).
    return jnp.where(x > 0.0, x, jnp.exp(x) - 1.0)


def _expert_kernel(x_ref, w1_ref, b1_ref, w2_ref, b2_ref, w3_ref, b3_ref, o_ref):
    # Fully fused 3-layer MLP on one batch tile: bf16 MXU operands, f32 accumulation,
    # ELU in f32, re-pack to bf16 between layers. The f32->bf16 cast of x is done here
    # (VPU, hidden under the input DMA) rather than as a separate HBM pass.
    x = x_ref[...].astype(jnp.bfloat16)                                   # [tb, d0]

    h1 = jnp.dot(x, w1_ref[...], preferred_element_type=jnp.float32) + b1_ref[...]
    h1 = _elu(h1).astype(jnp.bfloat16)                                    # [tb, d1]

    h2 = jnp.dot(h1, w2_ref[...], preferred_element_type=jnp.float32) + b2_ref[...]
    h2 = _elu(h2).astype(jnp.bfloat16)                                    # [tb, d2]

    h3 = jnp.dot(h2, w3_ref[...], preferred_element_type=jnp.float32) + b3_ref[...]
    o_ref[...] = h3.astype(o_ref.dtype)                                   # [tb, d3]


def prepare_params(w1, b1, w2, b2, w3, b3):
    """Pack parameters once, OUTSIDE the jitted forward: bf16 weights [d_in, d_out]
    (MXU operands), f32 biases [1, d_out]. Doing this per call would add an extra HBM
    pass over every weight on every forward."""
    pw = lambda w: jnp.asarray(w, jnp.bfloat16)
    pb = lambda b: jnp.asarray(b, jnp.float32).reshape(1, -1)
    return (pw(w1), pb(b1), pw(w2), pb(b2), pw(w3), pb(b3))


@functools.partial(jax.jit, static_argnames=("block_b",))
def single_expert_forward(x, params, *, block_b=None):
    """x: [B, d0] (f32 or bf16); params: output of prepare_params."""
    w1, b1, w2, b2, w3, b3 = params
    B, d0 = x.shape
    d1, d2, d3 = w1.shape[1], w2.shape[1], w3.shape[1]
    out_dtype = x.dtype

    if block_b is None:
        # Big tiles amortize the ~0.35 us/grid-step overhead; keep >= 4 steps when B
        # allows so the batch axis still pipelines / shards across cores.
        block_b = min(2048,
                      max(_SUBLANE, _round_up(pl.cdiv(B, 4), _SUBLANE)),
                      _round_up(B, _SUBLANE))
    block_b = _round_up(block_b, _SUBLANE)
    grid = (pl.cdiv(B, block_b),)   # ragged last tile handled by Pallas; no batch padding

    const2 = lambda i: (0, 0)       # weights/biases: same full block every grid step
    # Constant blocks are re-used every step -> single-buffer them (default 2-deep
    # buffering would only double their resident VMEM with zero DMA benefit).
    wspec = lambda shp: pl.BlockSpec(shp, const2, pipeline_mode=pl.Buffered(1))

    flops = 2 * B * (d0 * d1 + d1 * d2 + d2 * d3)
    transcendentals = B * (d1 + d2)                          # one exp per ELU element
    bytes_accessed = (
        x.size * x.dtype.itemsize
        + (w1.size + w2.size + w3.size) * 2                  # bf16 weights
        + (b1.size + b2.size + b3.size) * 4                  # f32 biases
        + B * d3 * jnp.dtype(out_dtype).itemsize             # unpadded output
    )

    return pl.pallas_call(
        _expert_kernel,
        out_shape=jax.ShapeDtypeStruct((B, d3), out_dtype),
        grid_spec=pltpu.PrefetchScalarGridSpec(
            num_scalar_prefetch=0,
            grid=grid,
            in_specs=[
                pl.BlockSpec((block_b, d0), lambda i: (i, 0)),   # x batch tile (f32, true d0)
                wspec((d0, d1)),                                 # layer1 W (bf16)
                wspec((1, d1)),                                  # layer1 b (f32)
                wspec((d1, d2)),                                 # layer2 W
                wspec((1, d2)),                                  # layer2 b
                wspec((d2, d3)),                                 # layer3 W
                wspec((1, d3)),                                  # layer3 b
            ],
            out_specs=pl.BlockSpec((block_b, d3), lambda i: (i, 0)),
        ),
        compiler_params=pltpu.CompilerParams(
            # TODO(synk): on v7x use dimension_semantics=(pltpu.CORE_PARALLEL,) (or an
            # explicit 2-wide core grid axis) to engage both TensorCores; set
            # vmem_limit_bytes explicitly on v5e once block_b / expert widths grow.
            dimension_semantics=("parallel",),
        ),
        cost_estimate=pl.CostEstimate(
            flops=flops,
            transcendentals=transcendentals,
            bytes_accessed=bytes_accessed,
        ),
    )(x, w1, b1, w2, b2, w3, b3)


def init_linear_params(key, d_in, d_out, dtype=jnp.float32):
    # PyTorch nn.Linear default init: U(-1/sqrt(d_in), 1/sqrt(d_in)).
    kw, kb = jax.random.split(key)
    bound = 1.0 / float(d_in) ** 0.5
    w = jax.random.uniform(kw, (d_in, d_out), dtype, minval=-bound, maxval=bound)
    b = jax.random.uniform(kb, (d_out,), dtype, minval=-bound, maxval=bound)
    return w, b


def reference_forward(x, w1, b1, w2, b2, w3, b3):
    # Mirrors the kernel's bf16 operand rounding (weights + activations) so the
    # comparison isolates kernel correctness rather than bf16-vs-f32 quantization.
    f = lambda a: a.astype(jnp.bfloat16).astype(jnp.float32)
    h1 = _elu(f(x) @ f(w1) + b1.astype(jnp.float32))
    h2 = _elu(f(h1) @ f(w2) + b2.astype(jnp.float32))
    return f(h2) @ f(w3) + b3.astype(jnp.float32)


if __name__ == "__main__":
    # Small shapes consistent with the module's expert_dims (4 dims -> 3 layers).
    expert_dims = [32, 64, 64, 16]   # d0, d1, d2, d3
    batch = 256                      # block_b=128 -> grid=(2,)

    key = jax.random.PRNGKey(0)
    kx, k1, k2, k3 = jax.random.split(key, 4)

    x = jax.random.normal(kx, (batch, expert_dims[0]), jnp.float32)
    w1, b1 = init_linear_params(k1, expert_dims[0], expert_dims[1])
    w2, b2 = init_linear_params(k2, expert_dims[1], expert_dims[2])
    w3, b3 = init_linear_params(k3, expert_dims[2], expert_dims[3])

    params = prepare_params(w1, b1, w2, b2, w3, b3)   # pack once, outside the forward

    out = single_expert_forward(x, params, block_b=128)
    out = jax.block_until_ready(out)

    ref = reference_forward(x, w1, b1, w2, b2, w3, b3)
    assert out.shape == (batch, expert_dims[3])
    assert jnp.allclose(out.astype(jnp.float32), ref, atol=2e-2, rtol=2e-2), \
        "mismatch vs reference"

    print("KERNEL_OK")
</pallas_src>

<mosaic_0001>
module attributes {stable_mosaic.version = 11 : i64} {
  func.func @_expert_kernel(%arg0: i32, %arg1: memref<128x32xf32, #tpu.memory_space<vmem>>, %arg2: memref<32x64xbf16, #tpu.memory_space<vmem>>, %arg3: memref<1x64xf32, #tpu.memory_space<vmem>>, %arg4: memref<64x64xbf16, #tpu.memory_space<vmem>>, %arg5: memref<1x64xf32, #tpu.memory_space<vmem>>, %arg6: memref<64x16xbf16, #tpu.memory_space<vmem>>, %arg7: memref<1x16xf32, #tpu.memory_space<vmem>>, %arg8: memref<128x16xf32, #tpu.memory_space<vmem>>) attributes {dimension_semantics = [#tpu.dimension_semantics<parallel>], iteration_bounds = array<i64: 2>, scalar_prefetch = 0 : i64, scratch_operands = 0 : i64, tpu.core_type = #tpu.core_type<tc>, window_params = [{transform_indices = @transform_0, window_bounds = array<i64: 128, 32>}, {pipeline_mode = #tpu.pipeline_mode<synchronous>, transform_indices = @transform_1, window_bounds = array<i64: 32, 64>}, {pipeline_mode = #tpu.pipeline_mode<synchronous>, transform_indices = @transform_2, window_bounds = array<i64: 1, 64>}, {pipeline_mode = #tpu.pipeline_mode<synchronous>, transform_indices = @transform_3, window_bounds = array<i64: 64, 64>}, {pipeline_mode = #tpu.pipeline_mode<synchronous>, transform_indices = @transform_4, window_bounds = array<i64: 1, 64>}, {pipeline_mode = #tpu.pipeline_mode<synchronous>, transform_indices = @transform_5, window_bounds = array<i64: 64, 16>}, {pipeline_mode = #tpu.pipeline_mode<synchronous>, transform_indices = @transform_6, window_bounds = array<i64: 1, 16>}, {transform_indices = @transform_7, window_bounds = array<i64: 128, 16>}]} {
    %c0 = arith.constant 0 : index
    %c0_0 = arith.constant 0 : index
    %0 = vector.load %arg1[%c0, %c0_0] : memref<128x32xf32, #tpu.memory_space<vmem>>, vector<128x32xf32>
    %1 = arith.truncf %0 : vector<128x32xf32> to vector<128x32xbf16>
    %c0_1 = arith.constant 0 : index
    %c0_2 = arith.constant 0 : index
    %2 = vector.load %arg2[%c0_1, %c0_2] : memref<32x64xbf16, #tpu.memory_space<vmem>>, vector<32x64xbf16>
    %cst = arith.constant dense<0.000000e+00> : vector<128x64xf32>
    %3 = tpu.matmul %1, %2, %cst {dimension_numbers = #tpu.dot_dimension_numbers<[1], [0], [0], [1], [0, 0, 1, 1], [], []>} : vector<128x32xbf16>, vector<32x64xbf16>, vector<128x64xf32> -> vector<128x64xf32>
    %c0_3 = arith.constant 0 : index
    %c0_4 = arith.constant 0 : index
    %4 = vector.load %arg3[%c0_3, %c0_4] : memref<1x64xf32, #tpu.memory_space<vmem>>, vector<1x64xf32>
    %5 = vector.broadcast %4 : vector<1x64xf32> to vector<128x64xf32>
    %6 = arith.addf %3, %5 : vector<128x64xf32>
    %cst_5 = arith.constant 0.000000e+00 : f32
    %7 = vector.broadcast %cst_5 : f32 to vector<128x64xf32>
    %8 = arith.cmpf ogt, %6, %7 : vector<128x64xf32>
    %9 = math.exp %6 : vector<128x64xf32>
    %cst_6 = arith.constant 1.000000e+00 : f32
    %10 = vector.broadcast %cst_6 : f32 to vector<128x64xf32>
    %11 = arith.subf %9, %10 : vector<128x64xf32>
    %12 = arith.select %8, %6, %11 : vector<128x64xi1>, vector<128x64xf32>
    %13 = arith.truncf %12 : vector<128x64xf32> to vector<128x64xbf16>
    %c0_7 = arith.constant 0 : index
    %c0_8 = arith.constant 0 : index
    %14 = vector.load %arg4[%c0_7, %c0_8] : memref<64x64xbf16, #tpu.memory_space<vmem>>, vector<64x64xbf16>
    %cst_9 = arith.constant dense<0.000000e+00> : vector<128x64xf32>
    %15 = tpu.matmul %13, %14, %cst_9 {dimension_numbers = #tpu.dot_dimension_numbers<[1], [0], [0], [1], [0, 0, 1, 1], [], []>} : vector<128x64xbf16>, vector<64x64xbf16>, vector<128x64xf32> -> vector<128x64xf32>
    %c0_10 = arith.constant 0 : index
    %c0_11 = arith.constant 0 : index
    %16 = vector.load %arg5[%c0_10, %c0_11] : memref<1x64xf32, #tpu.memory_space<vmem>>, vector<1x64xf32>
    %17 = vector.broadcast %16 : vector<1x64xf32> to vector<128x64xf32>
    %18 = arith.addf %15, %17 : vector<128x64xf32>
    %cst_12 = arith.constant 0.000000e+00 : f32
    %19 = vector.broadcast %cst_12 : f32 to vector<128x64xf32>
    %20 = arith.cmpf ogt, %18, %19 : vector<128x64xf32>
    %21 = math.exp %18 : vector<128x64xf32>
    %cst_13 = arith.constant 1.000000e+00 : f32
    %22 = vector.broadcast %cst_13 : f32 to vector<128x64xf32>
    %23 = arith.subf %21, %22 : vector<128x64xf32>
    %24 = arith.select %20, %18, %23 : vector<128x64xi1>, vector<128x64xf32>
    %25 = arith.truncf %24 : vector<128x64xf32> to vector<128x64xbf16>
    %c0_14 = arith.constant 0 : index
    %c0_15 = arith.constant 0 : index
    %26 = vector.load %arg6[%c0_14, %c0_15] : memref<64x16xbf16, #tpu.memory_space<vmem>>, vector<64x16xbf16>
    %cst_16 = arith.constant dense<0.000000e+00> : vector<128x16xf32>
    %27 = tpu.matmul %25, %26, %cst_16 {dimension_numbers = #tpu.dot_dimension_numbers<[1], [0], [0], [1], [0, 0, 1, 1], [], []>} : vector<128x64xbf16>, vector<64x16xbf16>, vector<128x16xf32> -> vector<128x16xf32>
    %c0_17 = arith.constant 0 : index
    %c0_18 = arith.constant 0 : index
    %28 = vector.load %arg7[%c0_17, %c0_18] : memref<1x16xf32, #tpu.memory_space<vmem>>, vector<1x16xf32>
    %29 = vector.broadcast %28 : vector<1x16xf32> to vector<128x16xf32>
    %30 = arith.addf %27, %29 : vector<128x16xf32>
    %c0_19 = arith.constant 0 : index
    %c0_20 = arith.constant 0 : index
    %31 = vector.load %arg8[%c0_19, %c0_20] : memref<128x16xf32, #tpu.memory_space<vmem>>, vector<128x16xf32>
    tpu.vector_store %arg8[%c0_19, %c0_20], %30 {strides = array<i32>} : memref<128x16xf32, #tpu.memory_space<vmem>>, vector<128x16xf32>,
    return
  }
  func.func @transform_0(%arg0: i32) -> (i32, i32) {
    %c0_i32 = arith.constant 0 : i32
    %c0_i32_0 = arith.constant 0 : i32
    return %arg0, %c0_i32 : i32, i32
  }
  func.func @transform_1(%arg0: i32) -> (i32, i32) {
    %c0_i32 = arith.constant 0 : i32
    %c0_i32_0 = arith.constant 0 : i32
    %c0_i32_1 = arith.constant 0 : i32
    return %c0_i32, %c0_i32_0 : i32, i32
  }
  func.func @transform_2(%arg0: i32) -> (i32, i32) {
    %c0_i32 = arith.constant 0 : i32
    %c0_i32_0 = arith.constant 0 : i32
    %c0_i32_1 = arith.constant 0 : i32
    return %c0_i32, %c0_i32_0 : i32, i32
  }
  func.func @transform_3(%arg0: i32) -> (i32, i32) {
    %c0_i32 = arith.constant 0 : i32
    %c0_i32_0 = arith.constant 0 : i32
    %c0_i32_1 = arith.constant 0 : i32
    return %c0_i32, %c0_i32_0 : i32, i32
  }
  func.func @transform_4(%arg0: i32) -> (i32, i32) {
    %c0_i32 = arith.constant 0 : i32
    %c0_i32_0 = arith.constant 0 : i32
    %c0_i32_1 = arith.constant 0 : i32
    return %c0_i32, %c0_i32_0 : i32, i32
  }
  func.func @transform_5(%arg0: i32) -> (i32, i32) {
    %c0_i32 = arith.constant 0 : i32
    %c0_i32_0 = arith.constant 0 : i32
    %c0_i32_1 = arith.constant 0 : i32
    return %c0_i32, %c0_i32_0 : i32, i32
  }
  func.func @transform_6(%arg0: i32) -> (i32, i32) {
    %c0_i32 = arith.constant 0 : i32
    %c0_i32_0 = arith.constant 0 : i32
    %c0_i32_1 = arith.constant 0 : i32
    return %c0_i32, %c0_i32_0 : i32, i32
  }
  func.func @transform_7(%arg0: i32) -> (i32, i32) {
    %c0_i32 = arith.constant 0 : i32
    %c0_i32_0 = arith.constant 0 : i32
    return %arg0, %c0_i32 : i32, i32
  }
}

</mosaic_0001>

<llo_original>
// kernel: single_expert_forward.1
$region0: #{single_expert_forward.1}
  #allocation0 [shape = 'u32[]', space=smem, size = 0x4, offset = 0x4, fixed_abs, tag = 'smem constant byte address 0x4 - core index']
  #allocation1 [shape = 'u32[144,128]{1,0:T(1,128)}', space=vmem, size = 0x12000, scoped, tag = 'internal scratch']
  %s0 = inlined_call_operand.vmem [shape: f32[256,32], index: 0, kind: input, shape index: {}]
  %s1 = inlined_call_operand.vmem [shape: bf16[32,64], index: 1, kind: input, shape index: {}]
  %s2 = inlined_call_operand.vmem [shape: f32[1,64], index: 2, kind: input, shape index: {}]
  %s3 = inlined_call_operand.vmem [shape: bf16[64,64], index: 3, kind: input, shape index: {}]
  %s4 = inlined_call_operand.vmem [shape: f32[1,64], index: 4, kind: input, shape index: {}]
  %s5 = inlined_call_operand.vmem [shape: bf16[64,16], index: 5, kind: input, shape index: {}]
  %s6 = inlined_call_operand.vmem [shape: f32[1,16], index: 6, kind: input, shape index: {}]
  %s7 = inlined_call_operand.vmem [shape: f32[256,16], index: 7, kind: output, shape index: {}]
  %s8 = sld [smem:[#allocation0]]
  $region61: #{single_expert_forward.1} parent=0
    _
  %s10 = ssub.s32 1, %s8
  %s11 = scalar_select 0, %s10, %s8
  loop: start=0, step=1, limit=4
  $region2: #{single_expert_forward.1} parent=0 // loop_pre_header
    _
  $region3: #{single_expert_forward.1} parent=0 // loop_header
    %s13 = sphi 0, %s17
    %p14 = scmp.ge.s32.totalorder %s13, 4
    %s23 = sphi 0, %s25
    %s26 = sphi 0, %s23
    %s27 = sphi 0, %s26
    %s43 = sphi 0, %s27
    %s47 = sphi 0, %s47
    %s49 = sphi 0, %s47
    %s50 = sphi 0, %s49
    %s64 = sphi 0, %s50
    %s68 = sphi 0, %s68
    %s70 = sphi 0, %s68
    %s71 = sphi 0, %s70
    %s85 = sphi 0, %s71
    %s89 = sphi 0, %s89
    %s91 = sphi 0, %s89
    %s92 = sphi 0, %s91
    %s106 = sphi 0, %s92
    %s110 = sphi 0, %s110
    %s112 = sphi 0, %s110
    %s113 = sphi 0, %s112
    %s127 = sphi 0, %s113
    %s131 = sphi 0, %s131
    %s133 = sphi 0, %s131
    %s134 = sphi 0, %s133
    %s148 = sphi 0, %s134
    %s152 = sphi 0, %s152
    %s154 = sphi 0, %s152
    %s155 = sphi 0, %s154
    %s169 = sphi 0, %s155
    %s175 = sphi 0, %s177
    %s178 = sphi 0, %s175
    %s179 = sphi 0, %s178
    %s195 = sphi 0, %s179
  $region4: #{single_expert_forward.1} parent=0 // loop_header_branch
    %16 = sbr.rel (%p14) target = $region8
  $region5: #{single_expert_forward.1} parent=0 // loop_body
    %s18 = ssub.s32 %s13, 1
    %s19 = ssub.s32 %s13, 2
    %s20 = sadd.s32 %s13, 1
    %s21 = ssub.s32 %s13, %s20
    %p22 = scmp.eq.s32.totalorder %s21, 0
    %s24 = sadd.s32 %s23, 1
    %s25 = scalar_select %p22, %s23, %s24
    %p28 = pneg %p22
    %p29 = scmp.eq.s32.totalorder %s13, 1
    %p30 = por %p28, %p29
    %p31 = scmp.ne.s32.totalorder %s23, %s26
    %p32 = scmp.eq.s32.totalorder %s13, 0
    %p33 = por %p31, %p32
    %p34 = scmp.ne.s32.totalorder %s23, %s26
    %p35 = scmp.eq.s32.totalorder %s18, 1
    %p36 = por %p34, %p35
    %p37 = scmp.ne.s32.totalorder %s26, %s27
    %p38 = scmp.eq.s32.totalorder %s18, 0
    %p39 = por %p37, %p38
    %p40 = scmp.ne.s32.totalorder %s26, %s27
    %p41 = scmp.eq.s32.totalorder %s19, 1
    %p42 = por %p40, %p41
    %p44 = scmp.ne.s32.totalorder %s27, %s43
    %p45 = scmp.eq.s32.totalorder %s19, 0
    %p46 = por %p44, %p45
    %s48 = sadd.s32 %s47, 1
    %p51 = scmp.eq.s32.totalorder %s13, 1
    %p52 = scmp.ne.s32.totalorder %s47, %s49
    %p53 = scmp.eq.s32.totalorder %s13, 0
    %p54 = por %p52, %p53
    %p55 = scmp.ne.s32.totalorder %s47, %s49
    %p56 = scmp.eq.s32.totalorder %s18, 1
    %p57 = por %p55, %p56
    %p58 = scmp.ne.s32.totalorder %s49, %s50
    %p59 = scmp.eq.s32.totalorder %s18, 0
    %p60 = por %p58, %p59
    %p61 = scmp.ne.s32.totalorder %s49, %s50
    %p62 = scmp.eq.s32.totalorder %s19, 1
    %p63 = por %p61, %p62
    %p65 = scmp.ne.s32.totalorder %s50, %s64
    %p66 = scmp.eq.s32.totalorder %s19, 0
    %p67 = por %p65, %p66
    %s69 = sadd.s32 %s68, 1
    %p72 = scmp.eq.s32.totalorder %s13, 1
    %p73 = scmp.ne.s32.totalorder %s68, %s70
    %p74 = scmp.eq.s32.totalorder %s13, 0
    %p75 = por %p73, %p74
    %p76 = scmp.ne.s32.totalorder %s68, %s70
    %p77 = scmp.eq.s32.totalorder %s18, 1
    %p78 = por %p76, %p77
    %p79 = scmp.ne.s32.totalorder %s70, %s71
    %p80 = scmp.eq.s32.totalorder %s18, 0
    %p81 = por %p79, %p80
    %p82 = scmp.ne.s32.totalorder %s70, %s71
    %p83 = scmp.eq.s32.totalorder %s19, 1
    %p84 = por %p82, %p83
    %p86 = scmp.ne.s32.totalorder %s71, %s85
    %p87 = scmp.eq.s32.totalorder %s19, 0
    %p88 = por %p86, %p87
    %s90 = sadd.s32 %s89, 1
    %p93 = scmp.eq.s32.totalorder %s13, 1
    %p94 = scmp.ne.s32.totalorder %s89, %s91
    %p95 = scmp.eq.s32.totalorder %s13, 0
    %p96 = por %p94, %p95
    %p97 = scmp.ne.s32.totalorder %s89, %s91
    %p98 = scmp.eq.s32.totalorder %s18, 1
    %p99 = por %p97, %p98
    %p100 = scmp.ne.s32.totalorder %s91, %s92
    %p101 = scmp.eq.s32.totalorder %s18, 0
    %p102 = por %p100, %p101
    %p103 = scmp.ne.s32.totalorder %s91, %s92
    %p104 = scmp.eq.s32.totalorder %s19, 1
    %p105 = por %p103, %p104
    %p107 = scmp.ne.s32.totalorder %s92, %s106
    %p108 = scmp.eq.s32.totalorder %s19, 0
    %p109 = por %p107, %p108
    %s111 = sadd.s32 %s110, 1
    %p114 = scmp.eq.s32.totalorder %s13, 1
    %p115 = scmp.ne.s32.totalorder %s110, %s112
    %p116 = scmp.eq.s32.totalorder %s13, 0
    %p117 = por %p115, %p116
    %p118 = scmp.ne.s32.totalorder %s110, %s112
    %p119 = scmp.eq.s32.totalorder %s18, 1
    %p120 = por %p118, %p119
    %p121 = scmp.ne.s32.totalorder %s112, %s113
    %p122 = scmp.eq.s32.totalorder %s18, 0
    %p123 = por %p121, %p122
    %p124 = scmp.ne.s32.totalorder %s112, %s113
    %p125 = scmp.eq.s32.totalorder %s19, 1
    %p126 = por %p124, %p125
    %p128 = scmp.ne.s32.totalorder %s113, %s127
    %p129 = scmp.eq.s32.totalorder %s19, 0
    %p130 = por %p128, %p129
    %s132 = sadd.s32 %s131, 1
    %p135 = scmp.eq.s32.totalorder %s13, 1
    %p136 = scmp.ne.s32.totalorder %s131, %s133
    %p137 = scmp.eq.s32.totalorder %s13, 0
    %p138 = por %p136, %p137
    %p139 = scmp.ne.s32.totalorder %s131, %s133
    %p140 = scmp.eq.s32.totalorder %s18, 1
    %p141 = por %p139, %p140
    %p142 = scmp.ne.s32.totalorder %s133, %s134
    %p143 = scmp.eq.s32.totalorder %s18, 0
    %p144 = por %p142, %p143
    %p145 = scmp.ne.s32.totalorder %s133, %s134
    %p146 = scmp.eq.s32.totalorder %s19, 1
    %p147 = por %p145, %p146
    %p149 = scmp.ne.s32.totalorder %s134, %s148
    %p150 = scmp.eq.s32.totalorder %s19, 0
    %p151 = por %p149, %p150
    %s153 = sadd.s32 %s152, 1
    %p156 = scmp.eq.s32.totalorder %s13, 1
    %p157 = scmp.ne.s32.totalorder %s152, %s154
    %p158 = scmp.eq.s32.totalorder %s13, 0
    %p159 = por %p157, %p158
    %p160 = scmp.ne.s32.totalorder %s152, %s154
    %p161 = scmp.eq.s32.totalorder %s18, 1
    %p162 = por %p160, %p161
    %p163 = scmp.ne.s32.totalorder %s154, %s155
    %p164 = scmp.eq.s32.totalorder %s18, 0
    %p165 = por %p163, %p164
    %p166 = scmp.ne.s32.totalorder %s154, %s155
    %p167 = scmp.eq.s32.totalorder %s19, 1
    %p168 = por %p166, %p167
    %p170 = scmp.ne.s32.totalorder %s155, %s169
    %p171 = scmp.eq.s32.totalorder %s19, 0
    %p172 = por %p170, %p171
    %s173 = ssub.s32 %s13, %s20
    %p174 = scmp.eq.s32.totalorder %s173, 0
    %s176 = sadd.s32 %s175, 1
    %s177 = scalar_select %p174, %s175, %s176
    %p180 = pneg %p174
    %p181 = scmp.eq.s32.totalorder %s13, 1
    %p182 = por %p180, %p181
    %p183 = scmp.ne.s32.totalorder %s175, %s178
    %p184 = scmp.eq.s32.totalorder %s13, 0
    %p185 = por %p183, %p184
    %p186 = scmp.ne.s32.totalorder %s175, %s178
    %p187 = scmp.eq.s32.totalorder %s18, 1
    %p188 = por %p186, %p187
    %p189 = scmp.ne.s32.totalorder %s178, %s179
    %p190 = scmp.eq.s32.totalorder %s18, 0
    %p191 = por %p189, %p190
    %p192 = scmp.ne.s32.totalorder %s178, %s179
    %p193 = scmp.eq.s32.totalorder %s19, 1
    %p194 = por %p192, %p193
    %p196 = scmp.ne.s32.totalorder %s179, %s195
    %p197 = scmp.eq.s32.totalorder %s19, 0
    %p198 = por %p196, %p197
    %p199 = scmp.le.s32.totalorder 1, %s13
    %p200 = scmp.lt.s32.totalorder %s13, 3
    %p201 = pnand %p199, %p200
    %p202 = pneg %p201
    // Predicated region
    $region9: #{single_expert_forward.1} parent=5 // pred_check
      _
    $region10: #{single_expert_forward.1} parent=5 // pred_check_branch
      %204 = sbr.rel (%p201) target = $region12
    $region11: #{single_expert_forward.1} parent=5 // pred_region
      %s205 = ssub.s32 %s13, 1
      // Predicated region
      $region13: #{single_expert_forward.1} parent=11 // pred_check
        %p206 = pneg %p60
      $region14: #{single_expert_forward.1} parent=11 // pred_check_branch
        %208 = sbr.rel (%p206) target = $region16
      $region15: #{single_expert_forward.1} parent=11 // pred_region
        _
      $region16: #{single_expert_forward.1} parent=11 // pred_fallthru
        _
      // Predicated region
      $region17: #{single_expert_forward.1} parent=11 // pred_check
        %p209 = pneg %p81
      $region18: #{single_expert_forward.1} parent=11 // pred_check_branch
        %211 = sbr.rel (%p209) target = $region20
      $region19: #{single_expert_forward.1} parent=11 // pred_region
        _
      $region20: #{single_expert_forward.1} parent=11 // pred_fallthru
        _
      // Predicated region
      $region21: #{single_expert_forward.1} parent=11 // pred_check
        %p212 = pneg %p102
      $region22: #{single_expert_forward.1} parent=11 // pred_check_branch
        %214 = sbr.rel (%p212) target = $region24
      $region23: #{single_expert_forward.1} parent=11 // pred_region
        _
      $region24: #{single_expert_forward.1} parent=11 // pred_fallthru
        _
      // Predicated region
      $region25: #{single_expert_forward.1} parent=11 // pred_check
        %p215 = pneg %p123
      $region26: #{single_expert_forward.1} parent=11 // pred_check_branch
        %217 = sbr.rel (%p215) target = $region28
      $region27: #{single_expert_forward.1} parent=11 // pred_region
        _
      $region28: #{single_expert_forward.1} parent=11 // pred_fallthru
        _
      // Predicated region
      $region29: #{single_expert_forward.1} parent=11 // pred_check
        %p218 = pneg %p144
      $region30: #{single_expert_forward.1} parent=11 // pred_check_branch
        %220 = sbr.rel (%p218) target = $region32
      $region31: #{single_expert_forward.1} parent=11 // pred_region
        _
      $region32: #{single_expert_forward.1} parent=11 // pred_fallthru
        _
      // Predicated region
      $region33: #{single_expert_forward.1} parent=11 // pred_check
        %p221 = pneg %p165
      $region34: #{single_expert_forward.1} parent=11 // pred_check_branch
        %223 = sbr.rel (%p221) target = $region36
      $region35: #{single_expert_forward.1} parent=11 // pred_region
        _
      $region36: #{single_expert_forward.1} parent=11 // pred_fallthru
        _
    $region12: #{single_expert_forward.1} parent=5 // pred_fallthru
      _
    %p224 = scmp.lt.s32.totalorder %s13, 2
    // Predicated region
    $region37: #{single_expert_forward.1} parent=5 // pred_check
      %p225 = pneg %p224
    $region38: #{single_expert_forward.1} parent=5 // pred_check_branch
      %227 = sbr.rel (%p225) target = $region40
    $region39: #{single_expert_forward.1} parent=5 // pred_region
      // Predicated region
      $region41: #{single_expert_forward.1} parent=39 // pred_check
        %p228 = pneg %p33
      $region42: #{single_expert_forward.1} parent=39 // pred_check_branch
        %230 = sbr.rel (%p228) target = $region44
      $region43: #{single_expert_forward.1} parent=39 // pred_region
        %s231 = smul.u32 16, %s13
        %p232 = scmp.lt.s32.totalorder %s231, 31
        %s233 = scalar_select %p232, %s231, 31
        %s234 = smul.addr %s233, 8
        %s235 = scalar_lea.vmem %s0, %s234
        %s236 = smul.u32 16, %s13
      $region44: #{single_expert_forward.1} parent=39 // pred_fallthru
        _
    $region40: #{single_expert_forward.1} parent=5 // pred_fallthru
      _
    %p237 = scmp.le.s32.totalorder 1, %s13
    %p238 = scmp.lt.s32.totalorder %s13, 3
    %p239 = pnand %p237, %p238
    %p240 = pneg %p239
    // Predicated region
    $region45: #{single_expert_forward.1} parent=5 // pred_check
      _
    $region46: #{single_expert_forward.1} parent=5 // pred_check_branch
      %242 = sbr.rel (%p239) target = $region48
    $region47: #{single_expert_forward.1} parent=5 // pred_region
      %s243 = ssub.s32 %s13, 1
      %s244 = smul.u32 16, %s18
      %p245 = scmp.lt.s32.totalorder %s244, 31
      %s246 = scalar_select %p245, %s244, 31
      %s247 = smul.addr %s246, 8
      %s248 = scalar_lea.vmem %s0, %s247
      %p249 = pneg %p39
      %p250 = pneg %p36
      %p251 = pneg %p60
      %p252 = pneg %p57
      %p253 = pneg %p81
      %p254 = pneg %p78
      %p255 = pneg %p102
      %p256 = pneg %p99
      %p257 = pneg %p123
      %p258 = pneg %p120
      %p259 = pneg %p144
      %p260 = pneg %p141
      %p261 = pneg %p165
      %p262 = pneg %p162
      %p263 = pneg %p191
      %p264 = pneg %p188
      %s265 = smul.u32 16, %s18
      %p266 = scmp.lt.s32.totalorder %s265, 31
      %s267 = scalar_select %p266, %s265, 31
      %s268 = smul.addr %s267, 8
      %s269 = scalar_lea.vmem %s7, %s268
      %s270 = smul.u32 16, %s18
      %p271 = scmp.lt.s32.totalorder %s270, 31
      %s272 = scalar_select %p271, %s270, 31
      %s273 = smul.addr %s272, 8
      %s274 = scalar_lea.vmem %s0, %s273
      %s275 = smul.u32 16, %s18
      %s276 = smul.u32 16, %s18
      %p277 = scmp.lt.s32.totalorder %s276, 31
      %s278 = scalar_select %p277, %s276, 31
      %s279 = smul.addr %s278, 8
      %s280 = scalar_lea.vmem %s7, %s279
      %s281 = smul.u32 16, %s18
      %v283 = vld [vmem:[%s274] sm:$0xff]
      %v284 = vld [vmem:[%s274 + $0x8] sm:$0xff]
      %v285 = vld [vmem:[%s274 + $0x10] sm:$0xff]
      %v286 = vld [vmem:[%s274 + $0x18] sm:$0xff]
      %v287 = vld [vmem:[%s274 + $0x20] sm:$0xff]
      %v288 = vld [vmem:[%s274 + $0x28] sm:$0xff]
      %v289 = vld [vmem:[%s274 + $0x30] sm:$0xff]
      %v290 = vld [vmem:[%s274 + $0x38] sm:$0xff]
      %v291 = vld [vmem:[%s274 + $0x40] sm:$0xff]
      %v292 = vld [vmem:[%s274 + $0x48] sm:$0xff]
      %v293 = vld [vmem:[%s274 + $0x50] sm:$0xff]
      %v294 = vld [vmem:[%s274 + $0x58] sm:$0xff]
      %v295 = vld [vmem:[%s274 + $0x60] sm:$0xff]
      %v296 = vld [vmem:[%s274 + $0x68] sm:$0xff]
      %v297 = vld [vmem:[%s274 + $0x70] sm:$0xff]
      %v298 = vld [vmem:[%s274 + $0x78] sm:$0xff]
      %v299 = vpack.c.bf16 %v284, %v283
      %v300 = vpack.c.bf16 %v286, %v285
      %v301 = vpack.c.bf16 %v288, %v287
      %v302 = vpack.c.bf16 %v290, %v289
      %v303 = vpack.c.bf16 %v292, %v291
      %v304 = vpack.c.bf16 %v294, %v293
      %v305 = vpack.c.bf16 %v296, %v295
      %v306 = vpack.c.bf16 %v298, %v297
      %v307 = vld [vmem:[%s1] sm:$0xf]
      %v308 = vld [vmem:[%s1 + $0x4] sm:$0xf]
      %v309 = vld [vmem:[%s1 + $0x8] sm:$0xf]
      %v310 = vld [vmem:[%s1 + $0xc] sm:$0xf]
      %v311 = vld [vmem:[%s2] sm:$0x1]
      %v313 = vlaneseq
      %v314 = vshrl.u32 %v313, 7
      %v315 = vsub.s32 0, %v314
      %v316 = vrot.slane %v311, %v315
      %v322 = vunpack.c.l.b16 %v307
      %v323 = vunpack.c.l.b16 %v308
      %v324 = vunpack.c.l.b16 %v309
      %v325 = vunpack.c.l.b16 %v310
      %v326 = vpack.c.b16 %v323, %v322
      %v327 = vpack.c.b16 %v325, %v324
      %vm330 = vcmask 261120
      %v332 = vsel %vm330, %v299, 0
      %v335 = vsel %vm330, %v300, 0
      %v338 = vsel %vm330, %v301, 0
      %v341 = vsel %vm330, %v302, 0
      %v344 = vsel %vm330, %v303, 0
      %v347 = vsel %vm330, %v304, 0
      %v350 = vsel %vm330, %v305, 0
      %v353 = vsel %vm330, %v306, 0
      %355 = vmatprep.subr.bf16.mxu0 0
      %356 = vmatpush1.bf16.msra.mxu0 0
      %357 = vmatprep.subr.bf16.mxu0 0
      %358 = vmatpush1.bf16.msra.mxu0 0
      %359 = vmatprep.subr.bf16.mxu0 0
      %360 = vmatpush1.bf16.msra.mxu0 0
      %361 = vmatprep.subr.bf16.mxu0 0
      %362 = vmatpush1.bf16.msra.mxu0 0
      %363 = vmatprep.subr.bf16.mxu0 0
      %364 = vmatpush1.bf16.msra.mxu0 0
      %365 = vmatprep.subr.bf16.mxu0 0
      %366 = vmatpush1.bf16.msra.mxu0 0
      %367 = vmatprep.subr.bf16.mxu0 0
      %368 = vmatpush1.bf16.msra.mxu0 %v327
      %369 = vmatprep.subr.bf16.mxu0 0
      %370 = vmatpush1.bf16.msra.mxu0 %v326
      %371 = vmatprep.subr.bf16.mxu0 0
      %372 = vmatpush2.bf16.msra.mxu0 0
      %373 = vmatprep.subr.bf16.mxu0 0
      %374 = vmatpush2.bf16.msra.mxu0 0
      %375 = vmatprep.subr.bf16.mxu0 0
      %376 = vmatpush2.bf16.msra.mxu0 0
      %377 = vmatprep.subr.bf16.mxu0 0
      %378 = vmatpush2.bf16.msra.mxu0 0
      %379 = vmatprep.subr.bf16.mxu0 0
      %380 = vmatpush2.bf16.msra.mxu0 0
      %381 = vmatprep.subr.bf16.mxu0 0
      %382 = vmatpush2.bf16.msra.mxu0 0
      %383 = vmatprep.subr.bf16.mxu0 0
      %384 = vmatpush2.bf16.msra.mxu0 0
      %385 = vmatprep.subr.bf16.mxu0 0
      %386 = vmatpush2.bf16.msra.mxu0 0
      %387 = vmatprep.mubr.bf16.mxu0 0
      %388 = vmatmul.mubr.bf16.gmra.mxu0 %v332
      %v389 = vpop.f32.mrf.mxu0
      %v390 = vadd.f32 %v316, %v389
      %v391 = vpop.f32.mrf.mxu0
      %v392 = vpop.f32.mrf.mxu0
      %v393 = vadd.f32 %v316, %v392
      %v394 = vpop.f32.mrf.mxu0
      %395 = vmatprep.mubr.bf16.mxu0 0
      %396 = vmatmul.mubr.bf16.gmra.mxu0 %v335
      %v397 = vpop.f32.mrf.mxu0
      %v398 = vadd.f32 %v316, %v397
      %v399 = vpop.f32.mrf.mxu0
      %v400 = vpop.f32.mrf.mxu0
      %v401 = vadd.f32 %v316, %v400
      %v402 = vpop.f32.mrf.mxu0
      %403 = vmatprep.mubr.bf16.mxu0 0
      %404 = vmatmul.mubr.bf16.gmra.mxu0 %v338
      %v405 = vpop.f32.mrf.mxu0
      %v406 = vadd.f32 %v316, %v405
      %v407 = vpop.f32.mrf.mxu0
      %v408 = vpop.f32.mrf.mxu0
      %v409 = vadd.f32 %v316, %v408
      %v410 = vpop.f32.mrf.mxu0
      %411 = vmatprep.mubr.bf16.mxu0 0
      %412 = vmatmul.mubr.bf16.gmra.mxu0 %v341
      %v413 = vpop.f32.mrf.mxu0
      %v414 = vadd.f32 %v316, %v413
      %v415 = vpop.f32.mrf.mxu0
      %v416 = vpop.f32.mrf.mxu0
      %v417 = vadd.f32 %v316, %v416
      %v418 = vpop.f32.mrf.mxu0
      %419 = vmatprep.mubr.bf16.mxu0 0
      %420 = vmatmul.mubr.bf16.gmra.mxu0 %v344
      %v421 = vpop.f32.mrf.mxu0
      %v422 = vadd.f32 %v316, %v421
      %v423 = vpop.f32.mrf.mxu0
      %v424 = vpop.f32.mrf.mxu0
      %v425 = vadd.f32 %v316, %v424
      %v426 = vpop.f32.mrf.mxu0
      %427 = vmatprep.mubr.bf16.mxu0 0
      %428 = vmatmul.mubr.bf16.gmra.mxu0 %v347
      %v429 = vpop.f32.mrf.mxu0
      %v430 = vadd.f32 %v316, %v429
      %v431 = vpop.f32.mrf.mxu0
      %v432 = vpop.f32.mrf.mxu0
      %v433 = vadd.f32 %v316, %v432
      %v434 = vpop.f32.mrf.mxu0
      %435 = vmatprep.mubr.bf16.mxu0 0
      %436 = vmatmul.mubr.bf16.gmra.mxu0 %v350
      %v437 = vpop.f32.mrf.mxu0
      %v438 = vadd.f32 %v316, %v437
      %v439 = vpop.f32.mrf.mxu0
      %v440 = vpop.f32.mrf.mxu0
      %v441 = vadd.f32 %v316, %v440
      %v442 = vpop.f32.mrf.mxu0
      %443 = vmatprep.mubr.bf16.mxu0 0
      %444 = vmatmul.mubr.bf16.gmra.mxu0 %v353
      %v445 = vpop.f32.mrf.mxu0
      %v446 = vadd.f32 %v316, %v445
      %v447 = vpop.f32.mrf.mxu0
      %v448 = vpop.f32.mrf.mxu0
      %v449 = vadd.f32 %v316, %v448
      %v450 = vpop.f32.mrf.mxu0
      %451 = vdwg.mxu0
      %vm452 = vcmp.gt.f32.partialorder %v390, 0.0
      %vm453 = vcmp.gt.f32.partialorder %v393, 0.0
      %vm454 = vcmp.gt.f32.partialorder %v398, 0.0
      %vm455 = vcmp.gt.f32.partialorder %v401, 0.0
      %vm456 = vcmp.gt.f32.partialorder %v406, 0.0
      %vm457 = vcmp.gt.f32.partialorder %v409, 0.0
      %vm458 = vcmp.gt.f32.partialorder %v414, 0.0
      %vm459 = vcmp.gt.f32.partialorder %v417, 0.0
      %vm460 = vcmp.gt.f32.partialorder %v422, 0.0
      %vm461 = vcmp.gt.f32.partialorder %v425, 0.0
      %vm462 = vcmp.gt.f32.partialorder %v430, 0.0
      %vm463 = vcmp.gt.f32.partialorder %v433, 0.0
      %vm464 = vcmp.gt.f32.partialorder %v438, 0.0
      %vm465 = vcmp.gt.f32.partialorder %v441, 0.0
      %vm466 = vcmp.gt.f32.partialorder %v446, 0.0
      %vm467 = vcmp.gt.f32.partialorder %v449, 0.0
      %v468 = vmul.f32 %v390, 1.442695
      %v469 = vpow.pop %v468
      %v470 = vmul.f32 %v393, 1.442695
      %v471 = vpow.pop %v470
      %v472 = vmul.f32 %v398, 1.442695
      %v473 = vpow.pop %v472
      %v474 = vmul.f32 %v401, 1.442695
      %v475 = vpow.pop %v474
      %v476 = vmul.f32 %v406, 1.442695
      %v477 = vpow.pop %v476
      %v478 = vmul.f32 %v409, 1.442695
      %v479 = vpow.pop %v478
      %v480 = vmul.f32 %v414, 1.442695
      %v481 = vpow.pop %v480
      %v482 = vmul.f32 %v417, 1.442695
      %v483 = vpow.pop %v482
      %v484 = vmul.f32 %v422, 1.442695
      %v485 = vpow.pop %v484
      %v486 = vmul.f32 %v425, 1.442695
      %v487 = vpow.pop %v486
      %v488 = vmul.f32 %v430, 1.442695
      %v489 = vpow.pop %v488
      %v490 = vmul.f32 %v433, 1.442695
      %v491 = vpow.pop %v490
      %v492 = vmul.f32 %v438, 1.442695
      %v493 = vpow.pop %v492
      %v494 = vmul.f32 %v441, 1.442695
      %v495 = vpow.pop %v494
      %v496 = vmul.f32 %v446, 1.442695
      %v497 = vpow.pop %v496
      %v498 = vmul.f32 %v449, 1.442695
      %v499 = vpow.pop %v498
      %v500 = vsub.f32 %v469, 1.0
      %v501 = vsub.f32 %v471, 1.0
      %v502 = vsub.f32 %v473, 1.0
      %v503 = vsub.f32 %v475, 1.0
      %v504 = vsub.f32 %v477, 1.0
      %v505 = vsub.f32 %v479, 1.0
      %v506 = vsub.f32 %v481, 1.0
      %v507 = vsub.f32 %v483, 1.0
      %v508 = vsub.f32 %v485, 1.0
      %v509 = vsub.f32 %v487, 1.0
      %v510 = vsub.f32 %v489, 1.0
      %v511 = vsub.f32 %v491, 1.0
      %v512 = vsub.f32 %v493, 1.0
      %v513 = vsub.f32 %v495, 1.0
      %v514 = vsub.f32 %v497, 1.0
      %v515 = vsub.f32 %v499, 1.0
      %v516 = vsel %vm452, %v390, %v500
      %v517 = vsel %vm453, %v393, %v501
      %v518 = vsel %vm454, %v398, %v502
      %v519 = vsel %vm455, %v401, %v503
      %v520 = vsel %vm456, %v406, %v504
      %v521 = vsel %vm457, %v409, %v505
      %v522 = vsel %vm458, %v414, %v506
      %v523 = vsel %vm459, %v417, %v507
      %v524 = vsel %vm460, %v422, %v508
      %v525 = vsel %vm461, %v425, %v509
      %v526 = vsel %vm462, %v430, %v510
      %v527 = vsel %vm463, %v433, %v511
      %v528 = vsel %vm464, %v438, %v512
      %v529 = vsel %vm465, %v441, %v513
      %v530 = vsel %vm466, %v446, %v514
      %v531 = vsel %vm467, %v449, %v515
      %v532 = vpack.c.bf16 %v517, %v516
      %v533 = vpack.c.bf16 %v519, %v518
      %v534 = vpack.c.bf16 %v521, %v520
      %v535 = vpack.c.bf16 %v523, %v522
      %v536 = vpack.c.bf16 %v525, %v524
      %v537 = vpack.c.bf16 %v527, %v526
      %v538 = vpack.c.bf16 %v529, %v528
      %v539 = vpack.c.bf16 %v531, %v530
      %v540 = vld [vmem:[%s3] sm:$0xf]
      %v541 = vld [vmem:[%s3 + $0x4] sm:$0xf]
      %v542 = vld [vmem:[%s3 + $0x8] sm:$0xf]
      %v543 = vld [vmem:[%s3 + $0xc] sm:$0xf]
      %v544 = vld [vmem:[%s3 + $0x10] sm:$0xf]
      %v545 = vld [vmem:[%s3 + $0x14] sm:$0xf]
      %v546 = vld [vmem:[%s3 + $0x18] sm:$0xf]
      %v547 = vld [vmem:[%s3 + $0x1c] sm:$0xf]
      %v548 = vld [vmem:[%s4] sm:$0x1]
      %v550 = vlaneseq
      %v551 = vshrl.u32 %v550, 7
      %v552 = vsub.s32 0, %v551
      %v553 = vrot.slane %v548, %v552
      %v563 = vunpack.c.l.b16 %v540
      %v564 = vunpack.c.l.b16 %v541
      %v565 = vunpack.c.l.b16 %v542
      %v566 = vunpack.c.l.b16 %v543
      %v567 = vunpack.c.l.b16 %v544
      %v568 = vunpack.c.l.b16 %v545
      %v569 = vunpack.c.l.b16 %v546
      %v570 = vunpack.c.l.b16 %v547
      %v571 = vpack.c.b16 %v564, %v563
      %v572 = vpack.c.b16 %v566, %v565
      %v573 = vpack.c.b16 %v568, %v567
      %v574 = vpack.c.b16 %v570, %v569
      %vm579 = vcmask 523264
      %v581 = vsel %vm579, %v532, 0
      %v584 = vsel %vm579, %v533, 0
      %v587 = vsel %vm579, %v534, 0
      %v590 = vsel %vm579, %v535, 0
      %v593 = vsel %vm579, %v536, 0
      %v596 = vsel %vm579, %v537, 0
      %v599 = vsel %vm579, %v538, 0
      %v602 = vsel %vm579, %v539, 0
      %604 = vmatprep.subr.bf16.mxu0 0
      %605 = vmatpush1.bf16.msra.mxu0 0
      %606 = vmatprep.subr.bf16.mxu0 0
      %607 = vmatpush1.bf16.msra.mxu0 0
      %608 = vmatprep.subr.bf16.mxu0 0
      %609 = vmatpush1.bf16.msra.mxu0 0
      %610 = vmatprep.subr.bf16.mxu0 0
      %611 = vmatpush1.bf16.msra.mxu0 0
      %612 = vmatprep.subr.bf16.mxu0 0
      %613 = vmatpush1.bf16.msra.mxu0 %v574
      %614 = vmatprep.subr.bf16.mxu0 0
      %615 = vmatpush1.bf16.msra.mxu0 %v573
      %616 = vmatprep.subr.bf16.mxu0 0
      %617 = vmatpush1.bf16.msra.mxu0 %v572
      %618 = vmatprep.subr.bf16.mxu0 0
      %619 = vmatpush1.bf16.msra.mxu0 %v571
      %620 = vmatprep.subr.bf16.mxu0 0
      %621 = vmatpush2.bf16.msra.mxu0 0
      %622 = vmatprep.subr.bf16.mxu0 0
      %623 = vmatpush2.bf16.msra.mxu0 0
      %624 = vmatprep.subr.bf16.mxu0 0
      %625 = vmatpush2.bf16.msra.mxu0 0
      %626 = vmatprep.subr.bf16.mxu0 0
      %627 = vmatpush2.bf16.msra.mxu0 0
      %628 = vmatprep.subr.bf16.mxu0 0
      %629 = vmatpush2.bf16.msra.mxu0 0
      %630 = vmatprep.subr.bf16.mxu0 0
      %631 = vmatpush2.bf16.msra.mxu0 0
      %632 = vmatprep.subr.bf16.mxu0 0
      %633 = vmatpush2.bf16.msra.mxu0 0
      %634 = vmatprep.subr.bf16.mxu0 0
      %635 = vmatpush2.bf16.msra.mxu0 0
      %636 = vmatprep.mubr.bf16.mxu0 0
      %637 = vmatmul.mubr.bf16.gmra.mxu0 %v581
      %v638 = vpop.f32.mrf.mxu0
      %v639 = vadd.f32 %v553, %v638
      %v640 = vpop.f32.mrf.mxu0
      %v641 = vpop.f32.mrf.mxu0
      %v642 = vadd.f32 %v553, %v641
      %v643 = vpop.f32.mrf.mxu0
      %644 = vmatprep.mubr.bf16.mxu0 0
      %645 = vmatmul.mubr.bf16.gmra.mxu0 %v584
      %v646 = vpop.f32.mrf.mxu0
      %v647 = vadd.f32 %v553, %v646
      %v648 = vpop.f32.mrf.mxu0
      %v649 = vpop.f32.mrf.mxu0
      %v650 = vadd.f32 %v553, %v649
      %v651 = vpop.f32.mrf.mxu0
      %652 = vmatprep.mubr.bf16.mxu0 0
      %653 = vmatmul.mubr.bf16.gmra.mxu0 %v587
      %v654 = vpop.f32.mrf.mxu0
      %v655 = vadd.f32 %v553, %v654
      %v656 = vpop.f32.mrf.mxu0
      %v657 = vpop.f32.mrf.mxu0
      %v658 = vadd.f32 %v553, %v657
      %v659 = vpop.f32.mrf.mxu0
      %660 = vmatprep.mubr.bf16.mxu0 0
      %661 = vmatmul.mubr.bf16.gmra.mxu0 %v590
      %v662 = vpop.f32.mrf.mxu0
      %v663 = vadd.f32 %v553, %v662
      %v664 = vpop.f32.mrf.mxu0
      %v665 = vpop.f32.mrf.mxu0
      %v666 = vadd.f32 %v553, %v665
      %v667 = vpop.f32.mrf.mxu0
      %668 = vmatprep.mubr.bf16.mxu0 0
      %669 = vmatmul.mubr.bf16.gmra.mxu0 %v593
      %v670 = vpop.f32.mrf.mxu0
      %v671 = vadd.f32 %v553, %v670
      %v672 = vpop.f32.mrf.mxu0
      %v673 = vpop.f32.mrf.mxu0
      %v674 = vadd.f32 %v553, %v673
      %v675 = vpop.f32.mrf.mxu0
      %676 = vmatprep.mubr.bf16.mxu0 0
      %677 = vmatmul.mubr.bf16.gmra.mxu0 %v596
      %v678 = vpop.f32.mrf.mxu0
      %v679 = vadd.f32 %v553, %v678
      %v680 = vpop.f32.mrf.mxu0
      %v681 = vpop.f32.mrf.mxu0
      %v682 = vadd.f32 %v553, %v681
      %v683 = vpop.f32.mrf.mxu0
      %684 = vmatprep.mubr.bf16.mxu0 0
      %685 = vmatmul.mubr.bf16.gmra.mxu0 %v599
      %v686 = vpop.f32.mrf.mxu0
      %v687 = vadd.f32 %v553, %v686
      %v688 = vpop.f32.mrf.mxu0
      %v689 = vpop.f32.mrf.mxu0
      %v690 = vadd.f32 %v553, %v689
      %v691 = vpop.f32.mrf.mxu0
      %692 = vmatprep.mubr.bf16.mxu0 0
      %693 = vmatmul.mubr.bf16.gmra.mxu0 %v602
      %v694 = vpop.f32.mrf.mxu0
      %v695 = vadd.f32 %v553, %v694
      %v696 = vpop.f32.mrf.mxu0
      %v697 = vpop.f32.mrf.mxu0
      %v698 = vadd.f32 %v553, %v697
      %v699 = vpop.f32.mrf.mxu0
      %700 = vdwg.mxu0
      %vm701 = vcmp.gt.f32.partialorder %v639, 0.0
      %vm702 = vcmp.gt.f32.partialorder %v642, 0.0
      %vm703 = vcmp.gt.f32.partialorder %v647, 0.0
      %vm704 = vcmp.gt.f32.partialorder %v650, 0.0
      %vm705 = vcmp.gt.f32.partialorder %v655, 0.0
      %vm706 = vcmp.gt.f32.partialorder %v658, 0.0
      %vm707 = vcmp.gt.f32.partialorder %v663, 0.0
      %vm708 = vcmp.gt.f32.partialorder %v666, 0.0
      %vm709 = vcmp.gt.f32.partialorder %v671, 0.0
      %vm710 = vcmp.gt.f32.partialorder %v674, 0.0
      %vm711 = vcmp.gt.f32.partialorder %v679, 0.0
      %vm712 = vcmp.gt.f32.partialorder %v682, 0.0
      %vm713 = vcmp.gt.f32.partialorder %v687, 0.0
      %vm714 = vcmp.gt.f32.partialorder %v690, 0.0
      %vm715 = vcmp.gt.f32.partialorder %v695, 0.0
      %vm716 = vcmp.gt.f32.partialorder %v698, 0.0
      %v717 = vmul.f32 %v639, 1.442695
      %v718 = vpow.pop %v717
      %v719 = vmul.f32 %v642, 1.442695
      %v720 = vpow.pop %v719
      %v721 = vmul.f32 %v647, 1.442695
      %v722 = vpow.pop %v721
      %v723 = vmul.f32 %v650, 1.442695
      %v724 = vpow.pop %v723
      %v725 = vmul.f32 %v655, 1.442695
      %v726 = vpow.pop %v725
      %v727 = vmul.f32 %v658, 1.442695
      %v728 = vpow.pop %v727
      %v729 = vmul.f32 %v663, 1.442695
      %v730 = vpow.pop %v729
      %v731 = vmul.f32 %v666, 1.442695
      %v732 = vpow.pop %v731
      %v733 = vmul.f32 %v671, 1.442695
      %v734 = vpow.pop %v733
      %v735 = vmul.f32 %v674, 1.442695
      %v736 = vpow.pop %v735
      %v737 = vmul.f32 %v679, 1.442695
      %v738 = vpow.pop %v737
      %v739 = vmul.f32 %v682, 1.442695
      %v740 = vpow.pop %v739
      %v741 = vmul.f32 %v687, 1.442695
      %v742 = vpow.pop %v741
      %v743 = vmul.f32 %v690, 1.442695
      %v744 = vpow.pop %v743
      %v745 = vmul.f32 %v695, 1.442695
      %v746 = vpow.pop %v745
      %v747 = vmul.f32 %v698, 1.442695
      %v748 = vpow.pop %v747
      %v749 = vsub.f32 %v718, 1.0
      %v750 = vsub.f32 %v720, 1.0
      %v751 = vsub.f32 %v722, 1.0
      %v752 = vsub.f32 %v724, 1.0
      %v753 = vsub.f32 %v726, 1.0
      %v754 = vsub.f32 %v728, 1.0
      %v755 = vsub.f32 %v730, 1.0
      %v756 = vsub.f32 %v732, 1.0
      %v757 = vsub.f32 %v734, 1.0
      %v758 = vsub.f32 %v736, 1.0
      %v759 = vsub.f32 %v738, 1.0
      %v760 = vsub.f32 %v740, 1.0
      %v761 = vsub.f32 %v742, 1.0
      %v762 = vsub.f32 %v744, 1.0
      %v763 = vsub.f32 %v746, 1.0
      %v764 = vsub.f32 %v748, 1.0
      %v765 = vsel %vm701, %v639, %v749
      %v766 = vsel %vm702, %v642, %v750
      %v767 = vsel %vm703, %v647, %v751
      %v768 = vsel %vm704, %v650, %v752
      %v769 = vsel %vm705, %v655, %v753
      %v770 = vsel %vm706, %v658, %v754
      %v771 = vsel %vm707, %v663, %v755
      %v772 = vsel %vm708, %v666, %v756
      %v773 = vsel %vm709, %v671, %v757
      %v774 = vsel %vm710, %v674, %v758
      %v775 = vsel %vm711, %v679, %v759
      %v776 = vsel %vm712, %v682, %v760
      %v777 = vsel %vm713, %v687, %v761
      %v778 = vsel %vm714, %v690, %v762
      %v779 = vsel %vm715, %v695, %v763
      %v780 = vsel %vm716, %v698, %v764
      %v781 = vpack.c.bf16 %v766, %v765
      %v782 = vpack.c.bf16 %v768, %v767
      %v783 = vpack.c.bf16 %v770, %v769
      %v784 = vpack.c.bf16 %v772, %v771
      %v785 = vpack.c.bf16 %v774, %v773
      %v786 = vpack.c.bf16 %v776, %v775
      %v787 = vpack.c.bf16 %v778, %v777
      %v788 = vpack.c.bf16 %v780, %v779
      %v789 = vld [vmem:[%s5] sm:$0xf]
      %v790 = vld [vmem:[%s5 + $0x4] sm:$0xf]
      %v791 = vld [vmem:[%s5 + $0x8] sm:$0xf]
      %v792 = vld [vmem:[%s5 + $0xc] sm:$0xf]
      %v793 = vld [vmem:[%s5 + $0x10] sm:$0xf]
      %v794 = vld [vmem:[%s5 + $0x14] sm:$0xf]
      %v795 = vld [vmem:[%s5 + $0x18] sm:$0xf]
      %v796 = vld [vmem:[%s5 + $0x1c] sm:$0xf]
      %v797 = vld [vmem:[%s6] sm:$0x1]
      %v799 = vlaneseq
      %v800 = vshrl.u32 %v799, 7
      %v801 = vsub.s32 0, %v800
      %v802 = vrot.slane %v797, %v801
      %v812 = vunpack.c.l.b16 %v789
      %v813 = vunpack.c.l.b16 %v790
      %v814 = vunpack.c.l.b16 %v791
      %v815 = vunpack.c.l.b16 %v792
      %v816 = vunpack.c.l.b16 %v793
      %v817 = vunpack.c.l.b16 %v794
      %v818 = vunpack.c.l.b16 %v795
      %v819 = vunpack.c.l.b16 %v796
      %v820 = vpack.c.b16 %v813, %v812
      %v821 = vpack.c.b16 %v815, %v814
      %v822 = vpack.c.b16 %v817, %v816
      %v823 = vpack.c.b16 %v819, %v818
      %v829 = vsel %vm579, %v781, 0
      %v832 = vsel %vm579, %v782, 0
      %v835 = vsel %vm579, %v783, 0
      %v838 = vsel %vm579, %v784, 0
      %v841 = vsel %vm579, %v785, 0
      %v844 = vsel %vm579, %v786, 0
      %v847 = vsel %vm579, %v787, 0
      %v850 = vsel %vm579, %v788, 0
      %852 = vmatprep.subr.bf16.mxu0 0
      %853 = vmatpush1.bf16.msra.mxu0 0
      %854 = vmatprep.subr.bf16.mxu0 0
      %855 = vmatpush1.bf16.msra.mxu0 0
      %856 = vmatprep.subr.bf16.mxu0 0
      %857 = vmatpush1.bf16.msra.mxu0 0
      %858 = vmatprep.subr.bf16.mxu0 0
      %859 = vmatpush1.bf16.msra.mxu0 0
      %860 = vmatprep.subr.bf16.mxu0 0
      %861 = vmatpush1.bf16.msra.mxu0 %v823
      %862 = vmatprep.subr.bf16.mxu0 0
      %863 = vmatpush1.bf16.msra.mxu0 %v822
      %864 = vmatprep.subr.bf16.mxu0 0
      %865 = vmatpush1.bf16.msra.mxu0 %v821
      %866 = vmatprep.subr.bf16.mxu0 0
      %867 = vmatpush1.bf16.msra.mxu0 %v820
      %868 = vmatprep.subr.bf16.mxu0 0
      %869 = vmatpush2.bf16.msra.mxu0 0
      %870 = vmatprep.subr.bf16.mxu0 0
      %871 = vmatpush2.bf16.msra.mxu0 0
      %872 = vmatprep.subr.bf16.mxu0 0
      %873 = vmatpush2.bf16.msra.mxu0 0
      %874 = vmatprep.subr.bf16.mxu0 0
      %875 = vmatpush2.bf16.msra.mxu0 0
      %876 = vmatprep.subr.bf16.mxu0 0
      %877 = vmatpush2.bf16.msra.mxu0 0
      %878 = vmatprep.subr.bf16.mxu0 0
      %879 = vmatpush2.bf16.msra.mxu0 0
      %880 = vmatprep.subr.bf16.mxu0 0
      %881 = vmatpush2.bf16.msra.mxu0 0
      %882 = vmatprep.subr.bf16.mxu0 0
      %883 = vmatpush2.bf16.msra.mxu0 0
      %884 = vmatprep.mubr.bf16.mxu0 0
      %885 = vmatmul.mubr.bf16.gmra.mxu0 %v829
      %v886 = vpop.f32.mrf.mxu0
      %v887 = vadd.f32 %v802, %v886
      %v888 = vpop.f32.mrf.mxu0
      %v889 = vpop.f32.mrf.mxu0
      %v890 = vadd.f32 %v802, %v889
      %v891 = vpop.f32.mrf.mxu0
      %892 = vmatprep.mubr.bf16.mxu0 0
      %893 = vmatmul.mubr.bf16.gmra.mxu0 %v832
      %v894 = vpop.f32.mrf.mxu0
      %v895 = vadd.f32 %v802, %v894
      %v896 = vpop.f32.mrf.mxu0
      %v897 = vpop.f32.mrf.mxu0
      %v898 = vadd.f32 %v802, %v897
      %v899 = vpop.f32.mrf.mxu0
      %900 = vmatprep.mubr.bf16.mxu0 0
      %901 = vmatmul.mubr.bf16.gmra.mxu0 %v835
      %v902 = vpop.f32.mrf.mxu0
      %v903 = vadd.f32 %v802, %v902
      %v904 = vpop.f32.mrf.mxu0
      %v905 = vpop.f32.mrf.mxu0
      %v906 = vadd.f32 %v802, %v905
      %v907 = vpop.f32.mrf.mxu0
      %908 = vmatprep.mubr.bf16.mxu0 0
      %909 = vmatmul.mubr.bf16.gmra.mxu0 %v838
      %v910 = vpop.f32.mrf.mxu0
      %v911 = vadd.f32 %v802, %v910
      %v912 = vpop.f32.mrf.mxu0
      %v913 = vpop.f32.mrf.mxu0
      %v914 = vadd.f32 %v802, %v913
      %v915 = vpop.f32.mrf.mxu0
      %916 = vmatprep.mubr.bf16.mxu0 0
      %917 = vmatmul.mubr.bf16.gmra.mxu0 %v841
      %v918 = vpop.f32.mrf.mxu0
      %v919 = vadd.f32 %v802, %v918
      %v920 = vpop.f32.mrf.mxu0
      %v921 = vpop.f32.mrf.mxu0
      %v922 = vadd.f32 %v802, %v921
      %v923 = vpop.f32.mrf.mxu0
      %924 = vmatprep.mubr.bf16.mxu0 0
      %925 = vmatmul.mubr.bf16.gmra.mxu0 %v844
      %v926 = vpop.f32.mrf.mxu0
      %v927 = vadd.f32 %v802, %v926
      %v928 = vpop.f32.mrf.mxu0
      %v929 = vpop.f32.mrf.mxu0
      %v930 = vadd.f32 %v802, %v929
      %v931 = vpop.f32.mrf.mxu0
      %932 = vmatprep.mubr.bf16.mxu0 0
      %933 = vmatmul.mubr.bf16.gmra.mxu0 %v847
      %v934 = vpop.f32.mrf.mxu0
      %v935 = vadd.f32 %v802, %v934
      %v936 = vpop.f32.mrf.mxu0
      %v937 = vpop.f32.mrf.mxu0
      %v938 = vadd.f32 %v802, %v937
      %v939 = vpop.f32.mrf.mxu0
      %940 = vmatprep.mubr.bf16.mxu0 0
      %941 = vmatmul.mubr.bf16.gmra.mxu0 %v850
      %v942 = vpop.f32.mrf.mxu0
      %v943 = vadd.f32 %v802, %v942
      %v944 = vpop.f32.mrf.mxu0
      %v945 = vpop.f32.mrf.mxu0
      %v946 = vadd.f32 %v802, %v945
      %v947 = vpop.f32.mrf.mxu0
      %948 = vdwg.mxu0
      %vm949 = vcmask 130048
      %950 = vst.msk [vmem:[%s280] sm:$0xff] %vm949, %v887
      %951 = vst.msk [vmem:[%s280 + $0x8] sm:$0xff] %vm949, %v890
      %952 = vst.msk [vmem:[%s280 + $0x10] sm:$0xff] %vm949, %v895
      %953 = vst.msk [vmem:[%s280 + $0x18] sm:$0xff] %vm949, %v898
      %954 = vst.msk [vmem:[%s280 + $0x20] sm:$0xff] %vm949, %v903
      %955 = vst.msk [vmem:[%s280 + $0x28] sm:$0xff] %vm949, %v906
      %956 = vst.msk [vmem:[%s280 + $0x30] sm:$0xff] %vm949, %v911
      %957 = vst.msk [vmem:[%s280 + $0x38] sm:$0xff] %vm949, %v914
      %958 = vst.msk [vmem:[%s280 + $0x40] sm:$0xff] %vm949, %v919
      %959 = vst.msk [vmem:[%s280 + $0x48] sm:$0xff] %vm949, %v922
      %960 = vst.msk [vmem:[%s280 + $0x50] sm:$0xff] %vm949, %v927
      %961 = vst.msk [vmem:[%s280 + $0x58] sm:$0xff] %vm949, %v930
      %962 = vst.msk [vmem:[%s280 + $0x60] sm:$0xff] %vm949, %v935
      %963 = vst.msk [vmem:[%s280 + $0x68] sm:$0xff] %vm949, %v938
      %964 = vst.msk [vmem:[%s280 + $0x70] sm:$0xff] %vm949, %v943
      %965 = vst.msk [vmem:[%s280 + $0x78] sm:$0xff] %vm949, %v946
      %s966 = smul.u32 16, %s18
      %p967 = scmp.lt.s32.totalorder %s966, 31
      %s968 = scalar_select %p967, %s966, 31
      %s969 = smul.addr %s968, 8
      %s970 = scalar_lea.vmem %s7, %s969
      // Predicated region
      $region49: #{single_expert_forward.1} parent=47 // pred_check
        %p971 = pneg %p188
      $region50: #{single_expert_forward.1} parent=47 // pred_check_branch
        %973 = sbr.rel (%p971) target = $region52
      $region51: #{single_expert_forward.1} parent=47 // pred_region
        %s974 = smul.u32 16, %s18
      $region52: #{single_expert_forward.1} parent=47 // pred_fallthru
        _
    $region48: #{single_expert_forward.1} parent=5 // pred_fallthru
      _
    %p975 = scmp.le.s32.totalorder 2, %s13
    // Predicated region
    $region53: #{single_expert_forward.1} parent=5 // pred_check
      %p976 = pneg %p975
    $region54: #{single_expert_forward.1} parent=5 // pred_check_branch
      %978 = sbr.rel (%p976) target = $region56
    $region55: #{single_expert_forward.1} parent=5 // pred_region
      %s979 = ssub.s32 %s13, 2
      // Predicated region
      $region57: #{single_expert_forward.1} parent=55 // pred_check
        %p980 = pneg %p194
      $region58: #{single_expert_forward.1} parent=55 // pred_check_branch
        %982 = sbr.rel (%p980) target = $region60
      $region59: #{single_expert_forward.1} parent=55 // pred_region
        %s983 = smul.u32 16, %s19
        %p984 = scmp.lt.s32.totalorder %s983, 31
        %s985 = scalar_select %p984, %s983, 31
        %s986 = smul.addr %s985, 8
        %s987 = scalar_lea.vmem %s7, %s986
      $region60: #{single_expert_forward.1} parent=55 // pred_fallthru
        _
    $region56: #{single_expert_forward.1} parent=5 // pred_fallthru
      _
  $region6: #{single_expert_forward.1} parent=0 // loop_footer
    %s17 = sadd.s32 1, %s13
  $region7: #{single_expert_forward.1} parent=0 // loop_footer_branch
    %12 = sbr.rel target = $region3
  $region8: #{single_expert_forward.1} parent=0 // loop_exit
    _

</llo_original>
